<compile_context>
chip_gen: v7x
topology: tpu7x:2x2x1
jax: 0.10.0
libtpu: 0.0.40
codegen_flags: <defaults>
</compile_context>

<pallas_src>
from functools import partial

import jax
import jax.numpy as jnp
from jax.experimental import pallas as pl
from jax.experimental.pallas import tpu as pltpu

BN_EPS = 1e-5
LANE = 128


# --------------------------------------------------------------------------
# Kernels
# --------------------------------------------------------------------------
def cbn1d_kernel(x_ref, gb_ref, out_ref, *, n_valid, inv_n):
    """Single-pass conditional BN.  x: (B, tC, Lp), gb: (B, tC, 2)."""
    B, tC, Lp = x_ref.shape
    unroll = B <= 8
    f32 = jnp.float32

    # Pass 1: per-channel mean over (B, valid L).  Padded columns are zero, so
    # they contribute nothing; inv_n = 1/(B * L_unpadded).
    def _sum(b, acc):
        xs = x_ref[b].astype(f32)                            # (tC, Lp) slab
        return acc + jnp.sum(xs, axis=-1, keepdims=True)

    sx = jax.lax.fori_loop(0, B, _sum, jnp.zeros((tC, 1), f32), unroll=unroll)
    mean = sx * inv_n                                        # (tC, 1)

    # Pass 2: centered variance (safer than E[x^2]-mean^2).  Mask padded
    # columns so (0 - mean)^2 does not pollute the sum.  Mask / broadcast are
    # hoisted out of the loop.
    col_mask = None
    if n_valid != Lp:
        col_mask = jax.lax.broadcasted_iota(jnp.int32, (tC, Lp), 1) < n_valid
    mean_row = jnp.broadcast_to(mean, (tC, Lp))

    def _sumsq(b, acc):
        dlt = x_ref[b].astype(f32) - mean_row
        if col_mask is not None:
            dlt = jnp.where(col_mask, dlt, 0.0)
        return acc + jnp.sum(dlt * dlt, axis=-1, keepdims=True)

    ssq = jax.lax.fori_loop(0, B, _sumsq, jnp.zeros((tC, 1), f32), unroll=unroll)
    inv_std = jax.lax.rsqrt(ssq * inv_n + BN_EPS)            # (tC, 1), biased var

    # Pass 3: out = A*x + D, slab by slab (one live f32 slab, lane-dense store).
    def _apply(b, carry):
        gb = gb_ref[b].astype(f32)                           # (tC, 2)
        a = gb[:, 0:1] * inv_std                             # (tC, 1)
        d = gb[:, 1:2] - a * mean                            # (tC, 1)
        out_ref[b] = (a * x_ref[b].astype(f32) + d).astype(out_ref.dtype)
        return carry

    jax.lax.fori_loop(0, B, _apply, 0, unroll=unroll)


def cbn1d_stats_kernel(x_ref, sum_ref, sumsq_ref):
    """Two-pass fallback, pass 1: per-channel sum / sum-sq accumulated over an
    'arbitrary' L grid axis.  x: (B, tC, tL); sum/sumsq: (tC, 1) f32 resident."""
    @pl.when(pl.program_id(1) == 0)
    def _():
        sum_ref[...] = jnp.zeros_like(sum_ref)
        sumsq_ref[...] = jnp.zeros_like(sumsq_ref)

    B, tC, _ = x_ref.shape
    f32 = jnp.float32
    zero = jnp.zeros((tC, 1), f32)

    def body(b, carry):
        s, ss = carry
        xs = x_ref[b].astype(f32)                            # (tC, tL) slab
        s = s + jnp.sum(xs, axis=-1, keepdims=True)
        ss = ss + jnp.sum(xs * xs, axis=-1, keepdims=True)
        return (s, ss)

    s, ss = jax.lax.fori_loop(0, B, body, (zero, zero), unroll=B <= 8)
    sum_ref[...] += s
    sumsq_ref[...] += ss


def cbn1d_apply_kernel(x_ref, ad_ref, out_ref):
    """Two-pass fallback, pass 2: out = A*x + D.  x: (B, tC, tL), ad: (B, tC, 2)."""
    B = x_ref.shape[0]

    def body(b, carry):
        ad = ad_ref[b].astype(jnp.float32)                   # (tC, 2)
        a = ad[:, 0:1]
        d = ad[:, 1:2]
        out_ref[b] = (a * x_ref[b].astype(jnp.float32) + d).astype(out_ref.dtype)
        return carry

    jax.lax.fori_loop(0, B, body, 0, unroll=B <= 8)


# --------------------------------------------------------------------------
# Tiling / VMEM budgeting helpers
# --------------------------------------------------------------------------
def _sublane_multiple(itemsize):
    # Packed dtypes tile sublanes in pairs/quads: f32 -> 8, bf16 -> 16, int8/fp8 -> 32.
    return max(8, 32 // max(int(itemsize), 1))


def _physical_vmem_bytes():
    try:
        info = pltpu.get_tpu_info()
        v = int(getattr(info, "vmem_capacity_bytes", 0))
        if v > 0:
            return v
    except Exception:
        pass
    return 64 * 1024 * 1024  # conservative default (v7x per-TensorCore VMEM)


def _single_pass_block_bytes(B, tC, Lp, x_isz, out_isz):
    io = 2 * B * tC * Lp * (x_isz + out_isz)   # double-buffered x-in + out blocks
    gb = 2 * B * tC * 2 * 4                    # double-buffered stacked (g,b)
    tmp = 3 * tC * Lp * 4                      # f32 slab temporaries in the kernel
    return io + gb + tmp


def _choose_c_tile(B, C, Lp, x_isz, out_isz, budget, sub_mult):
    """Largest channel tile (multiple of sub_mult dividing C, or C itself) whose
    blocks + kernel temporaries fit the budget.  Prefers a proper divisor of C
    so the grid has >= 2 steps (lets megacore shard on v7x; the extra ~0.35us
    per step is noise on v5e/v6e).  Returns None -> two-pass fallback."""
    cands = [t for t in range(sub_mult, C, sub_mult) if C % t == 0]
    fitting = [t for t in cands
               if _single_pass_block_bytes(B, t, Lp, x_isz, out_isz) <= budget]
    if fitting:
        return max(fitting)
    if not cands and _single_pass_block_bytes(B, C, Lp, x_isz, out_isz) <= budget:
        return C
    return None


def _choose_two_pass_tiles(B, C, Lp, x_isz, out_isz, budget, sub_mult):
    c_cands = [t for t in range(sub_mult, C + 1, sub_mult) if C % t == 0] or [C]
    l_cands = [t for t in range(LANE, Lp + 1, LANE) if Lp % t == 0]

    def blk(tc, tl):
        return (2 * B * tc * tl * (x_isz + out_isz) + 2 * B * tc * 2 * 4
                + 3 * tc * tl * 4)

    best, best_sz = (c_cands[0], l_cands[0]), 0
    for tc in c_cands:
        for tl in l_cands:
            if blk(tc, tl) <= budget and tc * tl > best_sz:
                best, best_sz = (tc, tl), tc * tl
    # TODO(synk): if even the minimum tile exceeds the budget (huge B), also
    # tile the batch axis as an extra "arbitrary" reduction dimension.
    return best


# --------------------------------------------------------------------------
# Wrapper
# --------------------------------------------------------------------------
def _cbn1d_two_pass(x_p, gb_eff, B, C, L, Lp, out_dtype, budget, sub_mult,
                    vmem_limit, x_isz, out_isz):
    tC, tL = _choose_two_pass_tiles(B, C, Lp, x_isz, out_isz, budget, sub_mult)
    gridC, gridL = C // tC, Lp // tL
    inv_n = 1.0 / float(B * L)

    sums, sumsqs = pl.pallas_call(
        cbn1d_stats_kernel,
        out_shape=(jax.ShapeDtypeStruct((C, 1), jnp.float32),
                   jax.ShapeDtypeStruct((C, 1), jnp.float32)),
        grid=(gridC, gridL),
        in_specs=[pl.BlockSpec((B, tC, tL), lambda ci, li: (0, ci, li))],
        out_specs=[pl.BlockSpec((tC, 1), lambda ci, li: (ci, 0)),
                   pl.BlockSpec((tC, 1), lambda ci, li: (ci, 0))],
        compiler_params=pltpu.CompilerParams(
            dimension_semantics=("parallel", "arbitrary"),
            vmem_limit_bytes=vmem_limit),
        cost_estimate=pl.CostEstimate(
            flops=3 * B * C * Lp, transcendentals=0,
            bytes_accessed=B * C * Lp * x_isz),
    )(x_p)

    mean = sums * inv_n                                       # (C, 1)
    # Streaming path uses E[x^2]-mean^2 (clamped); the single-pass path
    # (centered) is taken whenever the tile fits VMEM.
    var = jnp.maximum(sumsqs * inv_n - mean * mean, 0.0)
    inv_std = jax.lax.rsqrt(var + BN_EPS)                     # (C, 1)

    a = gb_eff[:, :, 0] * inv_std[None, :, 0]                 # (B, C)
    d = gb_eff[:, :, 1] - a * mean[None, :, 0]                # (B, C)
    ad = jnp.stack([a, d], axis=-1)                           # (B, C, 2) f32

    return pl.pallas_call(
        cbn1d_apply_kernel,
        out_shape=jax.ShapeDtypeStruct((B, C, Lp), out_dtype),
        grid=(gridC, gridL),
        in_specs=[pl.BlockSpec((B, tC, tL), lambda ci, li: (0, ci, li)),
                  pl.BlockSpec((B, tC, 2), lambda ci, li: (0, ci, 0))],
        out_specs=pl.BlockSpec((B, tC, tL), lambda ci, li: (0, ci, li)),
        compiler_params=pltpu.CompilerParams(
            dimension_semantics=("parallel", "parallel"),
            vmem_limit_bytes=vmem_limit),
        cost_estimate=pl.CostEstimate(
            flops=2 * B * C * Lp, transcendentals=0,
            bytes_accessed=B * C * Lp * (x_isz + out_isz)),
    )(x_p, ad)


def conditional_batchnorm1d(x, noise, w_sn, bias, bn_weight, bn_bias,
                            *, vmem_budget_bytes=None, force_two_pass=False):
    """x: (B, C, L), noise: (B, K), w_sn: (2C, K) spectrally-normalized weight,
    bias: (2C,), bn_weight/bn_bias: (C,)."""
    B, C, L = x.shape
    out_dtype = x.dtype
    x_isz = jnp.dtype(x.dtype).itemsize
    out_isz = jnp.dtype(out_dtype).itemsize

    # --- tiny conditional Linear + BN-affine folding (wrapper-side JAX glue) ---
    gb = jnp.dot(noise.astype(jnp.float32), w_sn.T.astype(jnp.float32))
    gb = gb + bias.astype(jnp.float32)                        # (B, 2C)
    gamma, beta = gb[:, :C], gb[:, C:]
    # gamma * (xhat*bn_w + bn_b) + beta  ==  g_eff * xhat + b_eff
    g_eff = gamma * bn_weight.astype(jnp.float32)[None, :]    # (B, C)
    b_eff = gamma * bn_bias.astype(jnp.float32)[None, :] + beta
    gb_eff = jnp.stack([g_eff, b_eff], axis=-1)               # (B, C, 2): one DMA

    # --- lane-dense store: pad L to a multiple of 128, slice back at the end ---
    Lp = ((L + LANE - 1) // LANE) * LANE
    x_p = x if Lp == L else jnp.pad(x, ((0, 0), (0, 0), (0, Lp - L)))

    # --- generation-aware VMEM budgeting ---
    phys = _physical_vmem_bytes()                 # 128 MiB (v5e/v6e) / 64 MiB (v7x)
    budget = int(phys * 0.5) if vmem_budget_bytes is None else int(vmem_budget_bytes)
    vmem_limit = int(phys * 0.75)
    sub_mult = _sublane_multiple(x_isz)

    tC = None if force_two_pass else _choose_c_tile(
        B, C, Lp, x_isz, out_isz, budget, sub_mult)

    if tC is None:
        out_p = _cbn1d_two_pass(x_p, gb_eff, B, C, L, Lp, out_dtype,
                                budget, sub_mult, vmem_limit, x_isz, out_isz)
    else:
        kernel = partial(cbn1d_kernel, n_valid=L, inv_n=1.0 / float(B * L))
        out_p = pl.pallas_call(
            kernel,
            out_shape=jax.ShapeDtypeStruct((B, C, Lp), out_dtype),
            grid=(C // tC,),
            in_specs=[
                pl.BlockSpec((B, tC, Lp), lambda c: (0, c, 0)),
                pl.BlockSpec((B, tC, 2), lambda c: (0, c, 0)),
            ],
            out_specs=pl.BlockSpec((B, tC, Lp), lambda c: (0, c, 0)),
            compiler_params=pltpu.CompilerParams(
                dimension_semantics=("parallel",),
                vmem_limit_bytes=vmem_limit),
            cost_estimate=pl.CostEstimate(
                flops=5 * B * C * Lp, transcendentals=C,
                bytes_accessed=B * C * Lp * (x_isz + out_isz)),
        )(x_p, gb_eff)

    return out_p if Lp == L else out_p[:, :, :L]


# --------------------------------------------------------------------------
# Parameter glue + reference
# --------------------------------------------------------------------------
def spectral_normalize(w, key, n_iter=30):
    """Glue: divide weight by its largest singular value (power iteration)."""
    u = jax.random.normal(key, (w.shape[0],))
    u = u / (jnp.linalg.norm(u) + 1e-12)
    for _ in range(n_iter):
        v = w.T @ u
        v = v / (jnp.linalg.norm(v) + 1e-12)
        u = w @ v
        u = u / (jnp.linalg.norm(u) + 1e-12)
    sigma = u @ (w @ v)
    return w / sigma


def reference(x, noise, w_sn, bias, bn_weight, bn_bias):
    """Pure-JAX reference of the PyTorch forward (training-mode BN)."""
    C = x.shape[1]
    mean = jnp.mean(x, axis=(0, 2), keepdims=True)
    var = jnp.mean((x - mean) ** 2, axis=(0, 2), keepdims=True)
    xhat = (x - mean) / jnp.sqrt(var + BN_EPS)
    xhat = xhat * bn_weight[None, :, None] + bn_bias[None, :, None]
    gb = noise @ w_sn.T + bias
    gamma, beta = gb[:, :C], gb[:, C:]
    return gamma[:, :, None] * xhat + beta[:, :, None]


# --------------------------------------------------------------------------
# Self-test
# --------------------------------------------------------------------------
if __name__ == "__main__":
    key = jax.random.PRNGKey(0)
    k_x, k_n, k_w, k_u, k_x2, k_n2 = jax.random.split(key, 6)

    # --- test 1: module-like small shapes; exercises pad-to-128 + single-pass ---
    B, C, L, K = 2, 4, 16, 8   # batch, num_features, length, condition_length
    x = jax.random.normal(k_x, (B, C, L), dtype=jnp.float32)
    noise = jax.random.normal(k_n, (B, K), dtype=jnp.float32)
    # Linear(condition_length, 2*num_features): weight ~ N(1, 0.02), bias zeros;
    # BatchNorm1d affine: weight ones, bias zeros.
    w_raw = 1.0 + 0.02 * jax.random.normal(k_w, (2 * C, K), dtype=jnp.float32)
    w_sn = spectral_normalize(w_raw, k_u)
    bias = jnp.zeros((2 * C,), jnp.float32)
    bn_w = jnp.ones((C,), jnp.float32)
    bn_b = jnp.zeros((C,), jnp.float32)

    out = jax.block_until_ready(
        conditional_batchnorm1d(x, noise, w_sn, bias, bn_w, bn_b))
    ref = reference(x, noise, w_sn, bias, bn_w, bn_b)
    assert out.shape == (B, C, L)
    assert jnp.allclose(out, ref, atol=1e-4, rtol=1e-4), "single-pass mismatch"

    # --- test 2: force the two-pass (L-tiled) fallback with a tiny VMEM budget ---
    B2, C2, L2 = 2, 16, 256
    x2 = jax.random.normal(k_x2, (B2, C2, L2), dtype=jnp.float32)
    noise2 = jax.random.normal(k_n2, (B2, K), dtype=jnp.float32)
    w_raw2 = 1.0 + 0.02 * jax.random.normal(k_w, (2 * C2, K), dtype=jnp.float32)
    w_sn2 = spectral_normalize(w_raw2, k_u)
    bias2 = jnp.zeros((2 * C2,), jnp.float32)
    bn_w2 = jnp.ones((C2,), jnp.float32)
    bn_b2 = jnp.zeros((C2,), jnp.float32)

    out2 = jax.block_until_ready(
        conditional_batchnorm1d(x2, noise2, w_sn2, bias2, bn_w2, bn_b2,
                                vmem_budget_bytes=70_000, force_two_pass=True))
    ref2 = reference(x2, noise2, w_sn2, bias2, bn_w2, bn_b2)
    assert out2.shape == (B2, C2, L2)
    assert jnp.allclose(out2, ref2, atol=1e-4, rtol=1e-4), "two-pass mismatch"

    print("KERNEL_OK")
</pallas_src>

<mosaic_0001>
module attributes {stable_mosaic.version = 11 : i64} {
  func.func @cbn1d_kernel(%arg0: i32, %arg1: memref<2x4x128xf32, #tpu.memory_space<vmem>>, %arg2: memref<2x4x2xf32, #tpu.memory_space<vmem>>, %arg3: memref<2x4x128xf32, #tpu.memory_space<vmem>>) attributes {dimension_semantics = [#tpu.dimension_semantics<parallel>], iteration_bounds = array<i64: 1>, scalar_prefetch = 0 : i64, scratch_operands = 0 : i64, tpu.core_type = #tpu.core_type<tc>, window_params = [{transform_indices = @transform_0, window_bounds = array<i64: 2, 4, 128>}, {transform_indices = @transform_1, window_bounds = array<i64: 2, 4, 2>}, {transform_indices = @transform_2, window_bounds = array<i64: 2, 4, 128>}]} {
    %cst = arith.constant 0.000000e+00 : f32
    %0 = vector.broadcast %cst : f32 to vector<4x1xf32>
    %c0_i32 = arith.constant 0 : i32
    %1 = arith.index_cast %c0_i32 : i32 to index
    %c0 = arith.constant 0 : index
    %c0_0 = arith.constant 0 : index
    %2 = vector.load %arg1[%1, %c0, %c0_0] : memref<2x4x128xf32, #tpu.memory_space<vmem>>, vector<1x4x128xf32>
    %3 = vector.shape_cast %2 : vector<1x4x128xf32> to vector<4x128xf32>
    %cst_1 = arith.constant dense<0.000000e+00> : vector<4xf32>
    %4 = vector.multi_reduction <add>, %3, %cst_1 [1] : vector<4x128xf32> to vector<4xf32>
    %5 = vector.shape_cast %4 : vector<4xf32> to vector<4x1xf32>
    %6 = arith.addf %0, %5 : vector<4x1xf32>
    %c1_i32 = arith.constant 1 : i32
    %7 = arith.index_cast %c1_i32 : i32 to index
    %c0_2 = arith.constant 0 : index
    %c0_3 = arith.constant 0 : index
    %8 = vector.load %arg1[%7, %c0_2, %c0_3] : memref<2x4x128xf32, #tpu.memory_space<vmem>>, vector<1x4x128xf32>
    %9 = vector.shape_cast %8 : vector<1x4x128xf32> to vector<4x128xf32>
    %cst_4 = arith.constant dense<0.000000e+00> : vector<4xf32>
    %10 = vector.multi_reduction <add>, %9, %cst_4 [1] : vector<4x128xf32> to vector<4xf32>
    %11 = vector.shape_cast %10 : vector<4xf32> to vector<4x1xf32>
    %12 = arith.addf %6, %11 : vector<4x1xf32>
    %c2_i32 = arith.constant 2 : i32
    %cst_5 = arith.constant 3.125000e-02 : f32
    %13 = vector.broadcast %cst_5 : f32 to vector<4x1xf32>
    %14 = arith.mulf %12, %13 : vector<4x1xf32>
    %15 = tpu.iota {dimensions = array<i32: 1>} : vector<4x128xi32>
    %c16_i32 = arith.constant 16 : i32
    %16 = vector.broadcast %c16_i32 : i32 to vector<4x128xi32>
    %17 = arith.cmpi slt, %15, %16 : vector<4x128xi32>
    %18 = vector.shape_cast %14 : vector<4x1xf32> to vector<4x1xf32>
    %19 = vector.broadcast %18 : vector<4x1xf32> to vector<4x128xf32>
    %cst_6 = arith.constant 0.000000e+00 : f32
    %20 = vector.broadcast %cst_6 : f32 to vector<4x1xf32>
    %c0_i32_7 = arith.constant 0 : i32
    %21 = arith.index_cast %c0_i32_7 : i32 to index
    %c0_8 = arith.constant 0 : index
    %c0_9 = arith.constant 0 : index
    %22 = vector.load %arg1[%21, %c0_8, %c0_9] : memref<2x4x128xf32, #tpu.memory_space<vmem>>, vector<1x4x128xf32>
    %23 = vector.shape_cast %22 : vector<1x4x128xf32> to vector<4x128xf32>
    %24 = arith.subf %23, %19 : vector<4x128xf32>
    %cst_10 = arith.constant 0.000000e+00 : f32
    %25 = vector.broadcast %cst_10 : f32 to vector<4x128xf32>
    %26 = arith.select %17, %24, %25 : vector<4x128xi1>, vector<4x128xf32>
    %27 = arith.mulf %26, %26 : vector<4x128xf32>
    %cst_11 = arith.constant dense<0.000000e+00> : vector<4xf32>
    %28 = vector.multi_reduction <add>, %27, %cst_11 [1] : vector<4x128xf32> to vector<4xf32>
    %29 = vector.shape_cast %28 : vector<4xf32> to vector<4x1xf32>
    %30 = arith.addf %20, %29 : vector<4x1xf32>
    %c1_i32_12 = arith.constant 1 : i32
    %31 = arith.index_cast %c1_i32_12 : i32 to index
    %c0_13 = arith.constant 0 : index
    %c0_14 = arith.constant 0 : index
    %32 = vector.load %arg1[%31, %c0_13, %c0_14] : memref<2x4x128xf32, #tpu.memory_space<vmem>>, vector<1x4x128xf32>
    %33 = vector.shape_cast %32 : vector<1x4x128xf32> to vector<4x128xf32>
    %34 = arith.subf %33, %19 : vector<4x128xf32>
    %cst_15 = arith.constant 0.000000e+00 : f32
    %35 = vector.broadcast %cst_15 : f32 to vector<4x128xf32>
    %36 = arith.select %17, %34, %35 : vector<4x128xi1>, vector<4x128xf32>
    %37 = arith.mulf %36, %36 : vector<4x128xf32>
    %cst_16 = arith.constant dense<0.000000e+00> : vector<4xf32>
    %38 = vector.multi_reduction <add>, %37, %cst_16 [1] : vector<4x128xf32> to vector<4xf32>
    %39 = vector.shape_cast %38 : vector<4xf32> to vector<4x1xf32>
    %40 = arith.addf %30, %39 : vector<4x1xf32>
    %c2_i32_17 = arith.constant 2 : i32
    %cst_18 = arith.constant 3.125000e-02 : f32
    %41 = vector.broadcast %cst_18 : f32 to vector<4x1xf32>
    %42 = arith.mulf %40, %41 : vector<4x1xf32>
    %cst_19 = arith.constant 9.99999974E-6 : f32
    %43 = vector.broadcast %cst_19 : f32 to vector<4x1xf32>
    %44 = arith.addf %42, %43 : vector<4x1xf32>
    %45 = math.rsqrt %44 : vector<4x1xf32>
    %c0_i32_20 = arith.constant 0 : i32
    %46 = arith.index_cast %c0_i32_20 : i32 to index
    %c0_21 = arith.constant 0 : index
    %c0_22 = arith.constant 0 : index
    %47 = vector.load %arg2[%46, %c0_21, %c0_22] : memref<2x4x2xf32, #tpu.memory_space<vmem>>, vector<1x4x2xf32>
    %48 = vector.shape_cast %47 : vector<1x4x2xf32> to vector<4x2xf32>
    %49 = vector.extract_strided_slice %48 {offsets = [0, 0], sizes = [4, 1], strides = [1, 1]} : vector<4x2xf32> to vector<4x1xf32>
    %50 = arith.mulf %49, %45 : vector<4x1xf32>
    %51 = vector.extract_strided_slice %48 {offsets = [0, 1], sizes = [4, 1], strides = [1, 1]} : vector<4x2xf32> to vector<4x1xf32>
    %52 = arith.mulf %50, %14 : vector<4x1xf32>
    %53 = arith.subf %51, %52 : vector<4x1xf32>
    %54 = arith.index_cast %c0_i32_20 : i32 to index
    %c0_23 = arith.constant 0 : index
    %c0_24 = arith.constant 0 : index
    %55 = vector.load %arg1[%54, %c0_23, %c0_24] : memref<2x4x128xf32, #tpu.memory_space<vmem>>, vector<1x4x128xf32>
    %56 = vector.shape_cast %55 : vector<1x4x128xf32> to vector<4x128xf32>
    %57 = vector.broadcast %50 : vector<4x1xf32> to vector<4x128xf32>
    %58 = arith.mulf %57, %56 : vector<4x128xf32>
    %59 = vector.broadcast %53 : vector<4x1xf32> to vector<4x128xf32>
    %60 = arith.addf %58, %59 : vector<4x128xf32>
    %61 = arith.index_cast %c0_i32_20 : i32 to index
    %c0_25 = arith.constant 0 : index
    %c0_26 = arith.constant 0 : index
    %62 = vector.load %arg3[%61, %c0_25, %c0_26] : memref<2x4x128xf32, #tpu.memory_space<vmem>>, vector<1x4x128xf32>
    %63 = vector.shape_cast %62 : vector<1x4x128xf32> to vector<4x128xf32>
    %64 = vector.shape_cast %60 : vector<4x128xf32> to vector<1x4x128xf32>
    tpu.vector_store %arg3[%61, %c0_25, %c0_26], %64 {strides = array<i32>} : memref<2x4x128xf32, #tpu.memory_space<vmem>>, vector<1x4x128xf32>,
    %c1_i32_27 = arith.constant 1 : i32
    %65 = arith.index_cast %c1_i32_27 : i32 to index
    %c0_28 = arith.constant 0 : index
    %c0_29 = arith.constant 0 : index
    %66 = vector.load %arg2[%65, %c0_28, %c0_29] : memref<2x4x2xf32, #tpu.memory_space<vmem>>, vector<1x4x2xf32>
    %67 = vector.shape_cast %66 : vector<1x4x2xf32> to vector<4x2xf32>
    %68 = vector.extract_strided_slice %67 {offsets = [0, 0], sizes = [4, 1], strides = [1, 1]} : vector<4x2xf32> to vector<4x1xf32>
    %69 = arith.mulf %68, %45 : vector<4x1xf32>
    %70 = vector.extract_strided_slice %67 {offsets = [0, 1], sizes = [4, 1], strides = [1, 1]} : vector<4x2xf32> to vector<4x1xf32>
    %71 = arith.mulf %69, %14 : vector<4x1xf32>
    %72 = arith.subf %70, %71 : vector<4x1xf32>
    %73 = arith.index_cast %c1_i32_27 : i32 to index
    %c0_30 = arith.constant 0 : index
    %c0_31 = arith.constant 0 : index
    %74 = vector.load %arg1[%73, %c0_30, %c0_31] : memref<2x4x128xf32, #tpu.memory_space<vmem>>, vector<1x4x128xf32>
    %75 = vector.shape_cast %74 : vector<1x4x128xf32> to vector<4x128xf32>
    %76 = vector.broadcast %69 : vector<4x1xf32> to vector<4x128xf32>
    %77 = arith.mulf %76, %75 : vector<4x128xf32>
    %78 = vector.broadcast %72 : vector<4x1xf32> to vector<4x128xf32>
    %79 = arith.addf %77, %78 : vector<4x128xf32>
    %80 = arith.index_cast %c1_i32_27 : i32 to index
    %c0_32 = arith.constant 0 : index
    %c0_33 = arith.constant 0 : index
    %81 = vector.load %arg3[%80, %c0_32, %c0_33] : memref<2x4x128xf32, #tpu.memory_space<vmem>>, vector<1x4x128xf32>
    %82 = vector.shape_cast %81 : vector<1x4x128xf32> to vector<4x128xf32>
    %83 = vector.shape_cast %79 : vector<4x128xf32> to vector<1x4x128xf32>
    tpu.vector_store %arg3[%80, %c0_32, %c0_33], %83 {strides = array<i32>} : memref<2x4x128xf32, #tpu.memory_space<vmem>>, vector<1x4x128xf32>,
    %c2_i32_34 = arith.constant 2 : i32
    return
  }
  func.func @transform_0(%arg0: i32) -> (i32, i32, i32) {
    %c0_i32 = arith.constant 0 : i32
    %c0_i32_0 = arith.constant 0 : i32
    %c0_i32_1 = arith.constant 0 : i32
    return %c0_i32, %arg0, %c0_i32_0 : i32, i32, i32
  }
  func.func @transform_1(%arg0: i32) -> (i32, i32, i32) {
    %c0_i32 = arith.constant 0 : i32
    %c0_i32_0 = arith.constant 0 : i32
    %c0_i32_1 = arith.constant 0 : i32
    return %c0_i32, %arg0, %c0_i32_0 : i32, i32, i32
  }
  func.func @transform_2(%arg0: i32) -> (i32, i32, i32) {
    %c0_i32 = arith.constant 0 : i32
    %c0_i32_0 = arith.constant 0 : i32
    %c0_i32_1 = arith.constant 0 : i32
    return %c0_i32, %arg0, %c0_i32_0 : i32, i32, i32
  }
}

</mosaic_0001>

<llo_original>
// kernel: tpu_custom_call.1
$region0: #{tpu_custom_call.1}
  #allocation0 [shape = 'u32[]', space=smem, size = 0x4, offset = 0x4, fixed_abs, tag = 'smem constant byte address 0x4 - core index']
  #allocation1 [shape = 'u32[144,128]{1,0:T(1,128)}', space=vmem, size = 0x12000, scoped, tag = 'internal scratch']
  %s0 = inlined_call_operand.vmem [shape: f32[2,4,128], index: 0, kind: input, shape index: {}]
  %s1 = inlined_call_operand.vmem [shape: f32[2,4,2], index: 1, kind: input, shape index: {}]
  %s2 = inlined_call_operand.hbm [shape: f32[2,4,128], index: 2, kind: output, shape index: {}]
  %s3 = sld [smem:[#allocation0]]
  $region18: #{tpu_custom_call.1} parent=0
    _
  %s5 = ssub.s32 1, %s3
  %s6 = scalar_select 0, %s5, %s3
  $region1: #{tpu_custom_call.1} parent=0
    #allocation2 [shape = 'u8[4096]{0}', space=vmem, size = 0x1000, scoped, tag = 'output window, operand 0, single buffered']
    #allocation3 [shape = 's32[1]{0}', space=sflag, size = 0x4, scoped, tag = 'scoped memory for tpu_custom_call.1']
    %7 = vsyncpa [#allocation3], 0
    // Predicated region
    $region2: #{tpu_custom_call.1} parent=1 // pred_check
      _
    $region3: #{tpu_custom_call.1} parent=1 // pred_check_branch
      %9 = sbr.rel (0) target = $region5
    $region4: #{tpu_custom_call.1} parent=1 // pred_region
      _
    $region5: #{tpu_custom_call.1} parent=1 // pred_fallthru
      _
    // Predicated region
    $region6: #{tpu_custom_call.1} parent=1 // pred_check
      _
    $region7: #{tpu_custom_call.1} parent=1 // pred_check_branch
      %11 = sbr.rel (0) target = $region9
    $region8: #{tpu_custom_call.1} parent=1 // pred_region
      _
    $region9: #{tpu_custom_call.1} parent=1 // pred_fallthru
      _
    %v12 = vld [vmem:[%s0] sm:$0xf]
    %vm13 = vcmask 1043456
    %v14 = vsel %vm13, %v12, 0.0
    %15 = vadd.xlane.f32.xlu0 %v14
    %v16 = vpop.xlane.xlu0 %15
    %v17 = vadd.f32 %v16, 0.0
    %s18 = scalar_lea.vmem %s0, 4
    %v19 = vld [vmem:[%s18] sm:$0xf]
    %v20 = vsel %vm13, %v19, 0.0
    %21 = vadd.xlane.f32.xlu0 %v20
    %v22 = vpop.xlane.xlu0 %21
    %v23 = vadd.f32 %v17, %v22
    %v24 = vmul.f32 %v23, 0.03125
    %v25 = vlaneseq
    %v26 = vand.u32 %v25, 127
    %vm27 = vcmp.lt.s32.totalorder %v26, 16
    %v28 = vsub.f32 %v12, %v24
    %v29 = vsel %vm27, %v28, 0.0
    %v30 = vmul.f32 %v29, %v29
    %v31 = vsel %vm13, %v30, 0.0
    %32 = vadd.xlane.f32.xlu0 %v31
    %v33 = vpop.xlane.xlu0 %32
    %v34 = vadd.f32 %v33, 0.0
    %v35 = vsub.f32 %v19, %v24
    %v36 = vsel %vm27, %v35, 0.0
    %v37 = vmul.f32 %v36, %v36
    %v38 = vsel %vm13, %v37, 0.0
    %39 = vadd.xlane.f32.xlu0 %v38
    %v40 = vpop.xlane.xlu0 %39
    %v41 = vadd.f32 %v34, %v40
    %v42 = vmul.f32 %v41, 0.03125
    %v43 = vadd.f32 %v42, 1e-05
    %v44 = vrsqrt.pop %v43
    %v45 = vld [vmem:[%s1] sm:$0xf]
    %v46 = vmul.f32 %v45, %v44
    %v47 = vmul.f32 %v46, %v24
    %49 = vrot.lane.b32.xlu0 %v47, 1
    %v50 = vpop.permute.xlu0 %49
    %v52 = vsub.f32 %v45, %v50
    %54 = vset.pattern.permute.xlu0 0
    %55 = vperm.xlu0 %54, %v46
    %v56 = vpop.permute.xlu0 %55
    %v58 = vmul.f32 %v56, %v12
    %60 = vset.pattern.permute.xlu0 1
    %61 = vperm.xlu0 %60, %v52
    %v62 = vpop.permute.xlu0 %61
    %v64 = vadd.f32 %v58, %v62
    %65 = vst [vmem:[#allocation2] sm:$0xf] %v64
    %s66 = scalar_lea.vmem %s1, 4
    %v67 = vld [vmem:[%s66] sm:$0xf]
    %v68 = vmul.f32 %v67, %v44
    %v69 = vmul.f32 %v68, %v24
    %71 = vrot.lane.b32.xlu0 %v69, 1
    %v72 = vpop.permute.xlu0 %71
    %v74 = vsub.f32 %v67, %v72
    %v75 = vld [vmem:[%s18] sm:$0xf]
    %77 = vset.pattern.permute.xlu0 0
    %78 = vperm.xlu0 %77, %v68
    %v79 = vpop.permute.xlu0 %78
    %v81 = vmul.f32 %v79, %v75
    %83 = vset.pattern.permute.xlu0 1
    %84 = vperm.xlu0 %83, %v74
    %v85 = vpop.permute.xlu0 %84
    %v87 = vadd.f32 %v81, %v85
    %s88 = scalar_lea.vmem [#allocation2], 4
    %89 = vst [vmem:[%s88] sm:$0xf] %v87
    // Predicated region
    $region10: #{tpu_custom_call.1} parent=1 // pred_check
      _
    $region11: #{tpu_custom_call.1} parent=1 // pred_check_branch
      %91 = sbr.rel (0) target = $region13
    $region12: #{tpu_custom_call.1} parent=1 // pred_region
      %s93 = ssub.s32 128, 128
      %94 = vsyncadd [#allocation3], %s93
      %s95 = sshll.u32 [#allocation2], 4
      %s96 = int_to_ptr.vmem [resolvable:$true] %s95
      %101 = dma.vmem_to_hbm [thread:$0]  %s96, 128, %s2, [#allocation3], 64, 64, 4
    $region13: #{tpu_custom_call.1} parent=1 // pred_fallthru
      _
    // Predicated region
    $region14: #{tpu_custom_call.1} parent=1 // pred_check
      _
    $region15: #{tpu_custom_call.1} parent=1 // pred_check_branch
      %103 = sbr.rel (0) target = $region17
    $region16: #{tpu_custom_call.1} parent=1 // pred_region
      %104 = dma.done [#allocation3], 128
    $region17: #{tpu_custom_call.1} parent=1 // pred_fallthru
      _
    %105 = vsyncpa [#allocation3], 1

</llo_original>
